<compile_context>
chip_gen: v6e
topology: v6e:2x2x1
jax: 0.10.0
libtpu: 0.0.40
codegen_flags: <defaults>
</compile_context>

<pallas_src>
import jax
import jax.numpy as jnp
from jax.experimental import pallas as pl
from jax.experimental.pallas import tpu as pltpu


def _mlp_kernel(x_ref, w1_ref, b1_ref, w2_ref, b2_ref, o_ref):
    # Hidden layer: bf16 MXU matmul, f32 accumulation, f32 bias + ReLU on VPU.
    h = jnp.dot(x_ref[...], w1_ref[...], preferred_element_type=jnp.float32)
    h = jnp.maximum(h + b1_ref[...], 0.0)                  # (TM,H) + (1,H)

    # Output layer: cast the activation back to the MXU stream dtype, keep the
    # f32 epilogue, single cast at the store (lane dim = true O, masked vst).
    y = jnp.dot(h.astype(w2_ref.dtype), w2_ref[...],
                preferred_element_type=jnp.float32)
    o_ref[...] = (y + b2_ref[...]).astype(o_ref.dtype)


def _round_up(n, m):
    return ((n + m - 1) // m) * m


def mlp_forward(x, w1, b1, w2, b2, *, batch_tile=8192):
    """Pallas forward pass of Net.

    x  : (B, n_feature)            -- any float dtype (cast to bf16 stream)
    w1 : (n_feature, n_hidden)     -- pre-transposed vs torch Linear.weight
    b1 : (n_hidden,) or (1, n_hidden)
    w2 : (n_hidden, n_output)
    b2 : (n_output,) or (1, n_output)
    returns (B, n_output) in x.dtype
    """
    B, F = x.shape
    H = w1.shape[1]
    O = w2.shape[1]
    out_dtype = x.dtype

    # MXU stream dtype (no-ops if init_params already produced these dtypes;
    # under jit an x cast fuses into x's producer).
    stream = jnp.bfloat16
    xs = x.astype(stream)
    w1 = jnp.asarray(w1, stream)
    w2 = jnp.asarray(w2, stream)
    b1 = jnp.asarray(b1, jnp.float32).reshape(1, H)
    b2 = jnp.asarray(b2, jnp.float32).reshape(1, O)

    if B <= 2 * batch_tile:
        # ---- Gridless path: raw, unpadded whole-array VMEM blocks.  No grid,
        # no pipelining, no wrapper pads/slices.  (Single TC has nothing to
        # gain from a grid once everything fits in VMEM.)
        return pl.pallas_call(
            _mlp_kernel,
            out_shape=jax.ShapeDtypeStruct((B, O), out_dtype),
            in_specs=[pl.BlockSpec(memory_space=pltpu.MemorySpace.VMEM)] * 5,
            out_specs=pl.BlockSpec(memory_space=pltpu.MemorySpace.VMEM),
        )(xs, w1, b1, w2, b2)

    # ---- Large batch: tile over batch only (>= 2 steps by construction, so
    # the "parallel" axis actually feeds both v7x TensorCores).  x / out are
    # streamed at their true lane widths (full-extent last dims are exempt
    # from the (8,128) rule); weights / biases are VMEM-resident across the
    # whole grid.  Single batch pad only if B is ragged w.r.t. the tile.
    TM = batch_tile
    Bg = _round_up(B, TM)
    if Bg != B:
        xs = jnp.pad(xs, ((0, Bg - B), (0, 0)))

    out = pl.pallas_call(
        _mlp_kernel,
        out_shape=jax.ShapeDtypeStruct((Bg, O), out_dtype),
        grid_spec=pltpu.PrefetchScalarGridSpec(
            num_scalar_prefetch=0,
            grid=(Bg // TM,),
            in_specs=[
                pl.BlockSpec((TM, F), lambda i: (i, 0)),   # streamed, true F
                pl.BlockSpec((F, H), lambda i: (0, 0)),    # resident
                pl.BlockSpec((1, H), lambda i: (0, 0)),    # resident
                pl.BlockSpec((H, O), lambda i: (0, 0)),    # resident
                pl.BlockSpec((1, O), lambda i: (0, 0)),    # resident
            ],
            out_specs=pl.BlockSpec((TM, O), lambda i: (i, 0)),  # true O lanes
        ),
        compiler_params=pltpu.CompilerParams(
            dimension_semantics=("parallel",),
        ),
    )(xs, w1, b1, w2, b2)

    return out if Bg == B else out[:B]


def init_params(key, n_feature, n_hidden, n_output):
    """One-time param prep (torch.nn.Linear-style init), already in kernel
    layout: weights pre-transposed to [in, out] and cast to bf16 for the MXU
    stream; biases kept f32 as (1, out)."""
    k1, k2, k3, k4 = jax.random.split(key, 4)
    bound1 = 1.0 / jnp.sqrt(n_feature)
    bound2 = 1.0 / jnp.sqrt(n_hidden)
    w1 = jax.random.uniform(k1, (n_feature, n_hidden), jnp.float32, -bound1, bound1)
    b1 = jax.random.uniform(k2, (1, n_hidden), jnp.float32, -bound1, bound1)
    w2 = jax.random.uniform(k3, (n_hidden, n_output), jnp.float32, -bound2, bound2)
    b2 = jax.random.uniform(k4, (1, n_output), jnp.float32, -bound2, bound2)
    return w1.astype(jnp.bfloat16), b1, w2.astype(jnp.bfloat16), b2


def reference_forward(x, w1, b1, w2, b2):
    """Pure-JAX reference mirroring the kernel numerics (bf16 MXU inputs,
    f32 accumulation, f32 epilogue)."""
    h = jnp.dot(x.astype(w1.dtype), w1, preferred_element_type=jnp.float32) + b1
    h = jnp.maximum(h, 0.0)
    y = jnp.dot(h.astype(w2.dtype), w2, preferred_element_type=jnp.float32) + b2
    return y.astype(x.dtype)


if __name__ == "__main__":
    n_feature, n_hidden, n_output = 16, 32, 4

    key = jax.random.PRNGKey(0)
    kx, kp, kx2, kx3 = jax.random.split(key, 4)
    w1, b1, w2, b2 = init_params(kp, n_feature, n_hidden, n_output)

    # --- Small batch: gridless whole-array path on raw, unpadded arrays.
    batch = 8
    x = jax.random.normal(kx, (batch, n_feature), jnp.float32)
    out = jax.block_until_ready(mlp_forward(x, w1, b1, w2, b2))
    ref = reference_forward(x, w1, b1, w2, b2)
    assert out.shape == (batch, n_output)
    assert jnp.allclose(out, ref, atol=1e-3, rtol=1e-3), "small-batch mismatch"

    # --- Grid path (tile=128 so the test stays small): exact multiple of TM.
    batch_big = 512
    x2 = jax.random.normal(kx2, (batch_big, n_feature), jnp.float32)
    out2 = jax.block_until_ready(mlp_forward(x2, w1, b1, w2, b2, batch_tile=128))
    ref2 = reference_forward(x2, w1, b1, w2, b2)
    assert out2.shape == (batch_big, n_output)
    assert jnp.allclose(out2, ref2, atol=1e-3, rtol=1e-3), "big-batch mismatch"

    # --- Grid path with a ragged batch (exercises the single batch pad + slice).
    batch_rag = 300
    x3 = jax.random.normal(kx3, (batch_rag, n_feature), jnp.float32)
    out3 = jax.block_until_ready(mlp_forward(x3, w1, b1, w2, b2, batch_tile=128))
    ref3 = reference_forward(x3, w1, b1, w2, b2)
    assert out3.shape == (batch_rag, n_output)
    assert jnp.allclose(out3, ref3, atol=1e-3, rtol=1e-3), "ragged-batch mismatch"

    print("KERNEL_OK")
</pallas_src>

<mosaic_0001>
module attributes {stable_mosaic.version = 11 : i64} {
  func.func @_mlp_kernel(%arg0: memref<8x16xbf16, #tpu.memory_space<vmem>>, %arg1: memref<16x32xbf16, #tpu.memory_space<vmem>>, %arg2: memref<1x32xf32, #tpu.memory_space<vmem>>, %arg3: memref<32x4xbf16, #tpu.memory_space<vmem>>, %arg4: memref<1x4xf32, #tpu.memory_space<vmem>>, %arg5: memref<8x4xf32, #tpu.memory_space<vmem>>) attributes {dimension_semantics = [], scalar_prefetch = 0 : i64, scratch_operands = 0 : i64, tpu.core_type = #tpu.core_type<tc>} {
    %c0 = arith.constant 0 : index
    %c0_0 = arith.constant 0 : index
    %0 = vector.load %arg0[%c0, %c0_0] : memref<8x16xbf16, #tpu.memory_space<vmem>>, vector<8x16xbf16>
    %c0_1 = arith.constant 0 : index
    %c0_2 = arith.constant 0 : index
    %1 = vector.load %arg1[%c0_1, %c0_2] : memref<16x32xbf16, #tpu.memory_space<vmem>>, vector<16x32xbf16>
    %cst = arith.constant dense<0.000000e+00> : vector<8x32xf32>
    %2 = tpu.matmul %0, %1, %cst {dimension_numbers = #tpu.dot_dimension_numbers<[1], [0], [0], [1], [0, 0, 1, 1], [], []>} : vector<8x16xbf16>, vector<16x32xbf16>, vector<8x32xf32> -> vector<8x32xf32>
    %c0_3 = arith.constant 0 : index
    %c0_4 = arith.constant 0 : index
    %3 = vector.load %arg2[%c0_3, %c0_4] : memref<1x32xf32, #tpu.memory_space<vmem>>, vector<1x32xf32>
    %4 = vector.broadcast %3 : vector<1x32xf32> to vector<8x32xf32>
    %5 = arith.addf %2, %4 : vector<8x32xf32>
    %cst_5 = arith.constant 0.000000e+00 : f32
    %6 = vector.broadcast %cst_5 : f32 to vector<8x32xf32>
    %7 = arith.maximumf %5, %6 : vector<8x32xf32>
    %8 = arith.truncf %7 : vector<8x32xf32> to vector<8x32xbf16>
    %c0_6 = arith.constant 0 : index
    %c0_7 = arith.constant 0 : index
    %9 = vector.load %arg3[%c0_6, %c0_7] : memref<32x4xbf16, #tpu.memory_space<vmem>>, vector<32x4xbf16>
    %cst_8 = arith.constant dense<0.000000e+00> : vector<8x4xf32>
    %10 = tpu.matmul %8, %9, %cst_8 {dimension_numbers = #tpu.dot_dimension_numbers<[1], [0], [0], [1], [0, 0, 1, 1], [], []>} : vector<8x32xbf16>, vector<32x4xbf16>, vector<8x4xf32> -> vector<8x4xf32>
    %c0_9 = arith.constant 0 : index
    %c0_10 = arith.constant 0 : index
    %11 = vector.load %arg4[%c0_9, %c0_10] : memref<1x4xf32, #tpu.memory_space<vmem>>, vector<1x4xf32>
    %12 = vector.broadcast %11 : vector<1x4xf32> to vector<8x4xf32>
    %13 = arith.addf %10, %12 : vector<8x4xf32>
    %c0_11 = arith.constant 0 : index
    %c0_12 = arith.constant 0 : index
    %14 = vector.load %arg5[%c0_11, %c0_12] : memref<8x4xf32, #tpu.memory_space<vmem>>, vector<8x4xf32>
    tpu.vector_store %arg5[%c0_11, %c0_12], %13 {strides = array<i32>} : memref<8x4xf32, #tpu.memory_space<vmem>>, vector<8x4xf32>,
    return
  }
}

</mosaic_0001>

<llo_original>
// kernel: tpu_custom_call.1
$region0: #{tpu_custom_call.1}
  #allocation0 [shape = 'u32[]', space=smem, size = 0x4, offset = 0x4, fixed_abs, tag = 'smem constant byte address 0x4 - core index']
  #allocation1 [shape = 'u32[144,128]{1,0:T(1,128)}', space=vmem, size = 0x12000, scoped, tag = 'internal scratch']
  %s0 = inlined_call_operand.vmem [shape: bf16[8,16], index: 0, kind: input, shape index: {}]
  %s1 = inlined_call_operand.vmem [shape: bf16[16,32], index: 1, kind: input, shape index: {}]
  %s2 = inlined_call_operand.vmem [shape: f32[1,32], index: 2, kind: input, shape index: {}]
  %s3 = inlined_call_operand.vmem [shape: bf16[32,4], index: 3, kind: input, shape index: {}]
  %s4 = inlined_call_operand.vmem [shape: f32[1,4], index: 4, kind: input, shape index: {}]
  %s5 = inlined_call_operand.vmem [shape: f32[8,4], index: 5, kind: output, shape index: {}]
  %s6 = sld [smem:[#allocation0]]
  $region30: #{tpu_custom_call.1} parent=0
    _
  %s8 = ssub.s32 1, %s6
  %s9 = scalar_select 0, %s8, %s6
  // Predicated region
  $region2: #{tpu_custom_call.1} parent=0 // pred_check
    _
  $region3: #{tpu_custom_call.1} parent=0 // pred_check_branch
    %11 = sbr.rel (0) target = $region5
  $region4: #{tpu_custom_call.1} parent=0 // pred_region
    _
  $region5: #{tpu_custom_call.1} parent=0 // pred_fallthru
    _
  // Predicated region
  $region6: #{tpu_custom_call.1} parent=0 // pred_check
    _
  $region7: #{tpu_custom_call.1} parent=0 // pred_check_branch
    %13 = sbr.rel (0) target = $region9
  $region8: #{tpu_custom_call.1} parent=0 // pred_region
    _
  $region9: #{tpu_custom_call.1} parent=0 // pred_fallthru
    _
  // Predicated region
  $region10: #{tpu_custom_call.1} parent=0 // pred_check
    _
  $region11: #{tpu_custom_call.1} parent=0 // pred_check_branch
    %15 = sbr.rel (0) target = $region13
  $region12: #{tpu_custom_call.1} parent=0 // pred_region
    _
  $region13: #{tpu_custom_call.1} parent=0 // pred_fallthru
    _
  // Predicated region
  $region14: #{tpu_custom_call.1} parent=0 // pred_check
    _
  $region15: #{tpu_custom_call.1} parent=0 // pred_check_branch
    %17 = sbr.rel (0) target = $region17
  $region16: #{tpu_custom_call.1} parent=0 // pred_region
    _
  $region17: #{tpu_custom_call.1} parent=0 // pred_fallthru
    _
  // Predicated region
  $region18: #{tpu_custom_call.1} parent=0 // pred_check
    _
  $region19: #{tpu_custom_call.1} parent=0 // pred_check_branch
    %19 = sbr.rel (0) target = $region21
  $region20: #{tpu_custom_call.1} parent=0 // pred_region
    _
  $region21: #{tpu_custom_call.1} parent=0 // pred_fallthru
    _
  %v21 = vld [vmem:[%s0] sm:$0xf]
  %v22 = vld [vmem:[%s1] sm:$0xf]
  %v23 = vld [vmem:[%s1 + $0x4] sm:$0xf]
  %v24 = vld [vmem:[%s2] sm:$0x1]
  %v26 = vlaneseq
  %v27 = vshrl.u32 %v26, 7
  %v28 = vsub.s32 0, %v27
  %v29 = vrot.slane %v24, %v28
  %v33 = vunpack.c.l.b16 %v22
  %v34 = vunpack.c.l.b16 %v23
  %v35 = vpack.c.b16 %v34, %v33
  %vm37 = vcmask 130048
  %v39 = vsel %vm37, %v21, 0
  %41 = vmatprep.subr.bf16.mxu0 0
  %42 = vmatpush1.bf16.msra.mxu0 0
  %43 = vmatprep.subr.bf16.mxu0 0
  %44 = vmatpush1.bf16.msra.mxu0 0
  %45 = vmatprep.subr.bf16.mxu0 0
  %46 = vmatpush1.bf16.msra.mxu0 0
  %47 = vmatprep.subr.bf16.mxu0 0
  %48 = vmatpush1.bf16.msra.mxu0 0
  %49 = vmatprep.subr.bf16.mxu0 0
  %50 = vmatpush1.bf16.msra.mxu0 0
  %51 = vmatprep.subr.bf16.mxu0 0
  %52 = vmatpush1.bf16.msra.mxu0 0
  %53 = vmatprep.subr.bf16.mxu0 0
  %54 = vmatpush1.bf16.msra.mxu0 0
  %55 = vmatprep.subr.bf16.mxu0 0
  %56 = vmatpush1.bf16.msra.mxu0 %v35
  %57 = vmatprep.subr.bf16.mxu0 0
  %58 = vmatpush2.bf16.msra.mxu0 0
  %59 = vmatprep.subr.bf16.mxu0 0
  %60 = vmatpush2.bf16.msra.mxu0 0
  %61 = vmatprep.subr.bf16.mxu0 0
  %62 = vmatpush2.bf16.msra.mxu0 0
  %63 = vmatprep.subr.bf16.mxu0 0
  %64 = vmatpush2.bf16.msra.mxu0 0
  %65 = vmatprep.subr.bf16.mxu0 0
  %66 = vmatpush2.bf16.msra.mxu0 0
  %67 = vmatprep.subr.bf16.mxu0 0
  %68 = vmatpush2.bf16.msra.mxu0 0
  %69 = vmatprep.subr.bf16.mxu0 0
  %70 = vmatpush2.bf16.msra.mxu0 0
  %71 = vmatprep.subr.bf16.mxu0 0
  %72 = vmatpush2.bf16.msra.mxu0 0
  %73 = vmatprep.mubr.bf16.mxu0 0
  %74 = vmatmul.mubr.bf16.gmra.mxu0 %v39
  %v75 = vpop.f32.mrf.mxu0
  %v76 = vadd.f32 %v29, %v75
  %v77 = vpop.f32.mrf.mxu0
  %v78 = vpop.f32.mrf.mxu0
  %v79 = vpop.f32.mrf.mxu0
  %80 = vdwg.mxu0
  %v81 = vmax.f32 %v76, 0.0
  %v82 = vpack.c.bf16 %v81, %v81
  %v83 = vld [vmem:[%s3] sm:$0xf]
  %v84 = vld [vmem:[%s3 + $0x4] sm:$0xf]
  %v85 = vld [vmem:[%s3 + $0x8] sm:$0xf]
  %v86 = vld [vmem:[%s3 + $0xc] sm:$0xf]
  %v87 = vld [vmem:[%s4] sm:$0x1]
  %v89 = vlaneseq
  %v90 = vshrl.u32 %v89, 7
  %v91 = vsub.s32 0, %v90
  %v92 = vrot.slane %v87, %v91
  %v98 = vunpack.c.l.b16 %v83
  %v99 = vunpack.c.l.b16 %v84
  %v100 = vunpack.c.l.b16 %v85
  %v101 = vunpack.c.l.b16 %v86
  %v102 = vpack.c.b16 %v99, %v98
  %v103 = vpack.c.b16 %v101, %v100
  %vm106 = vcmask 261120
  %v108 = vsel %vm106, %v82, 0
  %110 = vmatprep.subr.bf16.mxu0 0
  %111 = vmatpush1.bf16.msra.mxu0 0
  %112 = vmatprep.subr.bf16.mxu0 0
  %113 = vmatpush1.bf16.msra.mxu0 0
  %114 = vmatprep.subr.bf16.mxu0 0
  %115 = vmatpush1.bf16.msra.mxu0 0
  %116 = vmatprep.subr.bf16.mxu0 0
  %117 = vmatpush1.bf16.msra.mxu0 0
  %118 = vmatprep.subr.bf16.mxu0 0
  %119 = vmatpush1.bf16.msra.mxu0 0
  %120 = vmatprep.subr.bf16.mxu0 0
  %121 = vmatpush1.bf16.msra.mxu0 0
  %122 = vmatprep.subr.bf16.mxu0 0
  %123 = vmatpush1.bf16.msra.mxu0 %v103
  %124 = vmatprep.subr.bf16.mxu0 0
  %125 = vmatpush1.bf16.msra.mxu0 %v102
  %126 = vmatprep.subr.bf16.mxu0 0
  %127 = vmatpush2.bf16.msra.mxu0 0
  %128 = vmatprep.subr.bf16.mxu0 0
  %129 = vmatpush2.bf16.msra.mxu0 0
  %130 = vmatprep.subr.bf16.mxu0 0
  %131 = vmatpush2.bf16.msra.mxu0 0
  %132 = vmatprep.subr.bf16.mxu0 0
  %133 = vmatpush2.bf16.msra.mxu0 0
  %134 = vmatprep.subr.bf16.mxu0 0
  %135 = vmatpush2.bf16.msra.mxu0 0
  %136 = vmatprep.subr.bf16.mxu0 0
  %137 = vmatpush2.bf16.msra.mxu0 0
  %138 = vmatprep.subr.bf16.mxu0 0
  %139 = vmatpush2.bf16.msra.mxu0 0
  %140 = vmatprep.subr.bf16.mxu0 0
  %141 = vmatpush2.bf16.msra.mxu0 0
  %142 = vmatprep.mubr.bf16.mxu0 0
  %143 = vmatmul.mubr.bf16.gmra.mxu0 %v108
  %v144 = vpop.f32.mrf.mxu0
  %v145 = vadd.f32 %v92, %v144
  %v146 = vpop.f32.mrf.mxu0
  %v147 = vpop.f32.mrf.mxu0
  %v148 = vpop.f32.mrf.mxu0
  %149 = vdwg.mxu0
  %vm150 = vcmask 31744
  %151 = vst.msk [vmem:[%s5] sm:$0xff] %vm150, %v145
  // Predicated region
  $region22: #{tpu_custom_call.1} parent=0 // pred_check
    _
  $region23: #{tpu_custom_call.1} parent=0 // pred_check_branch
    %153 = sbr.rel (0) target = $region25
  $region24: #{tpu_custom_call.1} parent=0 // pred_region
    _
  $region25: #{tpu_custom_call.1} parent=0 // pred_fallthru
    _
  // Predicated region
  $region26: #{tpu_custom_call.1} parent=0 // pred_check
    _
  $region27: #{tpu_custom_call.1} parent=0 // pred_check_branch
    %155 = sbr.rel (0) target = $region29
  $region28: #{tpu_custom_call.1} parent=0 // pred_region
    _
  $region29: #{tpu_custom_call.1} parent=0 // pred_fallthru
    _

</llo_original>
